<compile_context>
chip_gen: v7x
topology: tpu7x:2x2x1
jax: 0.10.0
libtpu: 0.0.40
codegen_flags: <defaults>
</compile_context>

<pallas_src>
import math
from functools import partial

import jax
import jax.numpy as jnp
from jax.experimental import pallas as pl
from jax.experimental.pallas import tpu as pltpu


# ---------------------------------------------------------------------------
# Kernels
# ---------------------------------------------------------------------------

def _gate_kernel(w_hat_ref, m_hat_ref, w_ref):
    """W = tanh(W_hat) * sigmoid(M_hat); gate math in f32 (matches torch)."""
    w_hat = w_hat_ref[...].astype(jnp.float32)
    m_hat = m_hat_ref[...].astype(jnp.float32)
    gate = jnp.tanh(w_hat) * jax.nn.sigmoid(m_hat)
    w_ref[...] = gate.astype(w_ref.dtype)


def _matmul_kernel(x_ref, w_ref, o_ref, acc_ref):
    """y[i, j] = sum_k x[i, k] @ W[k, j]; K is the last ('arbitrary') axis."""
    @pl.when(pl.program_id(2) == 0)
    def _():
        acc_ref[...] = jnp.zeros_like(acc_ref)

    acc_ref[...] += jnp.dot(x_ref[...], w_ref[...],
                            preferred_element_type=jnp.float32)

    @pl.when(pl.program_id(2) == pl.num_programs(2) - 1)
    def _():
        o_ref[...] = acc_ref[...].astype(o_ref.dtype)


# ---------------------------------------------------------------------------
# Tiling helpers
# ---------------------------------------------------------------------------

def _round_up(v, m):
    return (v + m - 1) // m * m


def _cdiv(a, b):
    return -(-a // b)


def _vmem_capacity_bytes():
    try:
        info = pltpu.get_tpu_info()
        cap = getattr(info, "vmem_capacity_bytes", None)
        if cap:
            return int(cap)
    except Exception:
        pass
    return 64 << 20  # conservative (v7x per-TC VMEM); safe on every generation


def _pick_tile_n(out_p):
    """out_p is a multiple of 128; keep blocks lane-dense."""
    if out_p <= 1024:
        return out_p
    for cand in (1024, 768, 512, 384, 256, 128):
        if out_p % cand == 0:
            return cand
    return 128  # unreachable


def _pick_tile_k(in_dim, max_resident_k=2048):
    """Returns (tk, padded_in_dim).  Full-K resident unless in_dim is large."""
    in_p = _round_up(in_dim, 8)
    if in_p <= max_resident_k:
        return in_p, in_p
    tk = 512
    return tk, _round_up(in_p, tk)


def _pick_tile_b(batch, tk, tn, x_bytes, w_bytes, out_bytes, budget, tile_b):
    """VMEM-budget-aware batch tile (accounts for double-buffered x/out/W)."""
    b8 = _round_up(batch, 8)
    if tile_b is not None:
        return min(_round_up(tile_b, 8), b8)
    per_row = 2 * tk * x_bytes + 2 * tn * out_bytes + tn * 4   # x + out + f32 acc
    fixed = 2 * tk * tn * w_bytes                               # W tile, dbuf
    cap = max((budget - fixed) // per_row, 8)
    cap = min(int(cap), 1024)
    if cap >= 256:
        cap = cap // 256 * 256        # 256x256 MXU on v6e/v7x
    elif cap >= 128:
        cap = 128                     # 128x128 MXU on v5e
    else:
        cap = cap // 8 * 8
    if b8 <= cap:
        return b8                     # whole (padded) batch in one tile
    # Balance tiles across grid steps to minimise batch padding.
    grid_b = _cdiv(b8, cap)
    return _round_up(_cdiv(b8, grid_b), 8)


def _pick_gate_tile(dim, candidates):
    for cand in candidates:
        if dim % cand == 0:
            return cand
    return dim


# ---------------------------------------------------------------------------
# Wrappers
# ---------------------------------------------------------------------------

def _gate_pallas(w_hat, m_hat, out_dtype):
    """One-shot elementwise kernel: gated weight, padded shape, compute dtype."""
    in_p, out_p = w_hat.shape
    gr = _pick_gate_tile(in_p, (512, 256, 128, 64, 32, 16, 8))
    gc = _pick_gate_tile(out_p, (512, 256, 128))
    grid = (in_p // gr, out_p // gc)
    w_bytes = jnp.dtype(out_dtype).itemsize
    cost = pl.CostEstimate(
        flops=in_p * out_p,
        transcendentals=2 * in_p * out_p,
        bytes_accessed=2 * in_p * out_p * 4 + in_p * out_p * w_bytes,
    )
    return pl.pallas_call(
        _gate_kernel,
        out_shape=jax.ShapeDtypeStruct((in_p, out_p), out_dtype),
        grid_spec=pltpu.PrefetchScalarGridSpec(
            num_scalar_prefetch=0,
            grid=grid,
            in_specs=[pl.BlockSpec((gr, gc), lambda i, j: (i, j)),
                      pl.BlockSpec((gr, gc), lambda i, j: (i, j))],
            out_specs=pl.BlockSpec((gr, gc), lambda i, j: (i, j)),
        ),
        compiler_params=pltpu.CompilerParams(
            dimension_semantics=("parallel", "parallel")),
        cost_estimate=cost,
    )(w_hat, m_hat)


def nac_forward_pallas(x, w_hat, m_hat, *, tile_b=None, tile_k=None,
                       compute_dtype=jnp.bfloat16):
    """NAC forward (Pallas). x: (B, in_dim); w_hat, m_hat: (in_dim, out_dim).

    compute_dtype: dtype fed to the MXU for x and the gated W (accumulation is
    always f32).  bf16 (default) hits the native MXU path and halves x HBM
    traffic, at some accuracy loss vs. the f32 PyTorch reference; pass
    compute_dtype=None for full f32.
    """
    B, in_dim = x.shape
    in_dim_w, out_dim = w_hat.shape
    assert in_dim == in_dim_w and m_hat.shape == w_hat.shape

    out_dtype = x.dtype
    cdt = x.dtype if compute_dtype is None else compute_dtype
    x_bytes = jnp.dtype(cdt).itemsize
    w_bytes = jnp.dtype(cdt).itemsize
    out_bytes = jnp.dtype(out_dtype).itemsize

    # ---- Lane-dense output columns; K tiling. -------------------------------
    out_p = _round_up(out_dim, 128)
    tn = _pick_tile_n(out_p)
    grid_n = out_p // tn

    if tile_k is not None:
        tk = _round_up(tile_k, 8)
        in_p = _round_up(in_dim, tk)
    else:
        tk, in_p = _pick_tile_k(in_dim)
    grid_k = in_p // tk

    # ---- Generation-aware VMEM budget and batch tile. ------------------------
    vmem_cap = _vmem_capacity_bytes()
    budget = min(int(vmem_cap * 0.75), 100 << 20)
    tb = _pick_tile_b(B, tk, tn, x_bytes, w_bytes, out_bytes, budget, tile_b)
    b_p = _round_up(B, tb)
    grid_b = b_p // tb

    # ---- Precompute the gated weight (one-shot Pallas elementwise). ----------
    if (in_p, out_p) != (in_dim, out_dim):
        # tanh(0) * sigmoid(0) == 0: padded rows/cols contribute exactly zero.
        pad_w = [(0, in_p - in_dim), (0, out_p - out_dim)]
        w_hat = jnp.pad(w_hat, pad_w)
        m_hat = jnp.pad(m_hat, pad_w)
    w = _gate_pallas(w_hat, m_hat, cdt)

    # ---- Pad / cast x. --------------------------------------------------------
    if (b_p, in_p) != (B, in_dim):
        x = jnp.pad(x, [(0, b_p - B), (0, in_p - in_dim)])
    if x.dtype != cdt:
        x = x.astype(cdt)  # cast before pallas_call: the x DMA moves cdt bytes

    # ---- Matmul kernel. -------------------------------------------------------
    vmem_est = (2 * tb * tk * x_bytes          # x tiles (double buffered)
                + 2 * tk * tn * w_bytes        # W tiles (double buffered)
                + 2 * tb * tn * out_bytes      # out tiles (double buffered)
                + tb * tn * 4)                 # f32 accumulator scratch
    cap_limit = min(int(vmem_cap * 0.78), 100 << 20)
    vmem_limit = min(cap_limit, max(32 << 20, int(vmem_est * 1.3)))

    cost = pl.CostEstimate(
        flops=2 * b_p * in_p * out_p,
        transcendentals=0,
        bytes_accessed=(b_p * in_p * x_bytes
                        + grid_b * in_p * out_p * w_bytes
                        + b_p * out_p * out_bytes),
    )

    out_padded = pl.pallas_call(
        _matmul_kernel,
        out_shape=jax.ShapeDtypeStruct((b_p, out_p), out_dtype),
        grid_spec=pltpu.PrefetchScalarGridSpec(
            num_scalar_prefetch=0,
            grid=(grid_b, grid_n, grid_k),
            in_specs=[pl.BlockSpec((tb, tk), lambda i, j, k: (i, k)),
                      pl.BlockSpec((tk, tn), lambda i, j, k: (k, j))],
            out_specs=pl.BlockSpec((tb, tn), lambda i, j, k: (i, j)),
            scratch_shapes=[pltpu.VMEM((tb, tn), jnp.float32)],
        ),
        compiler_params=pltpu.CompilerParams(
            # Gate is precomputed -> no step-0 scratch-init dependency, so the
            # batch / out axes are safely 'parallel' (megacore on v7x);
            # the K reduction axis is last and 'arbitrary'.
            dimension_semantics=("parallel", "parallel", "arbitrary"),
            vmem_limit_bytes=vmem_limit,
        ),
        cost_estimate=cost,
    )(x, w)

    if (b_p, out_p) != (B, out_dim):
        out_padded = out_padded[:B, :out_dim]
    return out_padded


def nac_reference(x, w_hat, m_hat):
    W = jnp.tanh(w_hat) * jax.nn.sigmoid(m_hat)
    return x @ W


def nac_forward(x, w_hat, m_hat, **kwargs):
    """Shape-based dispatch: tiny problems go to plain XLA (fused gate+matmul)."""
    B, _ = x.shape
    out_dim = w_hat.shape[1]
    if B * out_dim < 256 * 128:
        return nac_reference(x, w_hat, m_hat)
    return nac_forward_pallas(x, w_hat, m_hat, **kwargs)


def xavier_uniform(key, shape, dtype=jnp.float32):
    # Matches torch.nn.init.xavier_uniform_ for a 2-D (fan_in, fan_out) tensor.
    fan_in, fan_out = shape
    a = math.sqrt(6.0 / (fan_in + fan_out))
    return jax.random.uniform(key, shape, dtype=dtype, minval=-a, maxval=a)


if __name__ == "__main__":
    key = jax.random.PRNGKey(0)
    keys = jax.random.split(key, 9)

    # --- Test 1: small shape, full-f32 path (tight tolerance). ---------------
    batch, in_dim, out_dim = 8, 32, 16
    x = jax.random.normal(keys[0], (batch, in_dim), dtype=jnp.float32)
    w_hat = xavier_uniform(keys[1], (in_dim, out_dim))
    m_hat = xavier_uniform(keys[2], (in_dim, out_dim))

    y = jax.block_until_ready(
        nac_forward_pallas(x, w_hat, m_hat, compute_dtype=None))
    y_ref = nac_reference(x, w_hat, m_hat)
    assert y.shape == (batch, out_dim)
    assert jnp.allclose(y, y_ref, atol=1e-5, rtol=1e-5), "mismatch (f32 small)"

    # --- Test 2: batch tiling (grid_b=2), default bf16 MXU feed. -------------
    B2, K2, N2 = 256, 64, 96
    x2 = jax.random.normal(keys[3], (B2, K2), dtype=jnp.float32)
    w2 = xavier_uniform(keys[4], (K2, N2))
    m2 = xavier_uniform(keys[5], (K2, N2))

    y2 = jax.block_until_ready(nac_forward_pallas(x2, w2, m2, tile_b=128))
    y2_ref = nac_reference(x2, w2, m2)
    assert y2.shape == (B2, N2)
    assert jnp.allclose(y2, y2_ref, atol=3e-2, rtol=3e-2), "mismatch (bf16 tiled)"

    # --- Test 3: K-reduction grid axis + f32 accumulator (grid_k=2). ---------
    B3, K3, N3 = 256, 256, 64
    x3 = jax.random.normal(keys[6], (B3, K3), dtype=jnp.float32)
    w3 = xavier_uniform(keys[7], (K3, N3))
    m3 = xavier_uniform(keys[8], (K3, N3))

    y3 = jax.block_until_ready(
        nac_forward_pallas(x3, w3, m3, tile_b=128, tile_k=128))
    y3_ref = nac_reference(x3, w3, m3)
    assert y3.shape == (B3, N3)
    assert jnp.allclose(y3, y3_ref, atol=5e-2, rtol=5e-2), "mismatch (K-tiled)"

    print("KERNEL_OK")
</pallas_src>

<mosaic_0001>
module attributes {stable_mosaic.version = 11 : i64} {
  func.func @_gate_kernel(%arg0: i32, %arg1: i32, %arg2: memref<32x128xf32, #tpu.memory_space<vmem>>, %arg3: memref<32x128xf32, #tpu.memory_space<vmem>>, %arg4: memref<32x128xf32, #tpu.memory_space<vmem>>) attributes {dimension_semantics = [#tpu.dimension_semantics<parallel>, #tpu.dimension_semantics<parallel>], iteration_bounds = array<i64: 1, 1>, scalar_prefetch = 0 : i64, scratch_operands = 0 : i64, tpu.core_type = #tpu.core_type<tc>, window_params = [{transform_indices = @transform_0, window_bounds = array<i64: 32, 128>}, {transform_indices = @transform_1, window_bounds = array<i64: 32, 128>}, {transform_indices = @transform_2, window_bounds = array<i64: 32, 128>}]} {
    %c0 = arith.constant 0 : index
    %c0_0 = arith.constant 0 : index
    %0 = vector.load %arg2[%c0, %c0_0] : memref<32x128xf32, #tpu.memory_space<vmem>>, vector<32x128xf32>
    %c0_1 = arith.constant 0 : index
    %c0_2 = arith.constant 0 : index
    %1 = vector.load %arg3[%c0_1, %c0_2] : memref<32x128xf32, #tpu.memory_space<vmem>>, vector<32x128xf32>
    %2 = math.tanh %0 : vector<32x128xf32>
    %3 = arith.negf %1 : vector<32x128xf32>
    %4 = math.exp %3 : vector<32x128xf32>
    %cst = arith.constant 1.000000e+00 : f32
    %5 = vector.broadcast %cst : f32 to vector<32x128xf32>
    %6 = arith.addf %5, %4 : vector<32x128xf32>
    %7 = arith.divf %5, %6 : vector<32x128xf32>
    %8 = arith.mulf %2, %7 : vector<32x128xf32>
    %c0_3 = arith.constant 0 : index
    %c0_4 = arith.constant 0 : index
    %9 = vector.load %arg4[%c0_3, %c0_4] : memref<32x128xf32, #tpu.memory_space<vmem>>, vector<32x128xf32>
    tpu.vector_store %arg4[%c0_3, %c0_4], %8 {strides = array<i32>} : memref<32x128xf32, #tpu.memory_space<vmem>>, vector<32x128xf32>,
    return
  }
  func.func @transform_0(%arg0: i32, %arg1: i32) -> (i32, i32) {
    %c0_i32 = arith.constant 0 : i32
    return %arg0, %arg1 : i32, i32
  }
  func.func @transform_1(%arg0: i32, %arg1: i32) -> (i32, i32) {
    %c0_i32 = arith.constant 0 : i32
    return %arg0, %arg1 : i32, i32
  }
  func.func @transform_2(%arg0: i32, %arg1: i32) -> (i32, i32) {
    %c0_i32 = arith.constant 0 : i32
    return %arg0, %arg1 : i32, i32
  }
}

</mosaic_0001>

<llo_original>
// kernel: tpu_custom_call.1
$region0: #{tpu_custom_call.1}
  #allocation0 [shape = 'u32[]', space=smem, size = 0x4, offset = 0x4, fixed_abs, tag = 'smem constant byte address 0x4 - core index']
  #allocation1 [shape = 'u32[144,128]{1,0:T(1,128)}', space=vmem, size = 0x12000, scoped, tag = 'internal scratch']
  %s0 = inlined_call_operand.hbm [shape: f32[32,128], index: 0, kind: input, shape index: {}]
  %s1 = inlined_call_operand.hbm [shape: f32[32,128], index: 1, kind: input, shape index: {}]
  %s2 = inlined_call_operand.hbm [shape: f32[32,128], index: 2, kind: output, shape index: {}]
  %s3 = sld [smem:[#allocation0]]
  $region26: #{tpu_custom_call.1} parent=0
    _
  %s5 = ssub.s32 1, %s3
  %s6 = scalar_select 0, %s5, %s3
  $region1: #{tpu_custom_call.1} parent=0
    #allocation2 [shape = 'u8[16384]{0}', space=vmem, size = 0x4000, scoped, tag = 'input window, operand 0, single buffered']
    #allocation3 [shape = 's32[1]{0}', space=sflag, size = 0x4, scoped, tag = 'scoped memory for tpu_custom_call.1']
    #allocation4 [shape = 's32[1]{0}', space=sflag, size = 0x4, scoped, tag = 'scoped memory for tpu_custom_call.1']
    #allocation5 [shape = 'u8[16384]{0}', space=vmem, size = 0x4000, scoped, tag = 'input window, operand 1, single buffered']
    #allocation6 [shape = 's32[1]{0}', space=sflag, size = 0x4, scoped, tag = 'scoped memory for tpu_custom_call.1']
    #allocation7 [shape = 'u8[16384]{0}', space=vmem, size = 0x4000, scoped, tag = 'output window, operand 0, single buffered']
    %7 = vsyncpa [#allocation3], 0
    %8 = vsyncpa [#allocation6], 0
    %9 = vsyncpa [#allocation4], 0
    // Predicated region
    $region2: #{tpu_custom_call.1} parent=1 // pred_check
      _
    $region3: #{tpu_custom_call.1} parent=1 // pred_check_branch
      %11 = sbr.rel (0) target = $region5
    $region4: #{tpu_custom_call.1} parent=1 // pred_region
      %s13 = ssub.s32 512, 512
      %14 = vsyncadd [#allocation3], %s13
      %s15 = sshll.u32 [#allocation2], 4
      %s16 = int_to_ptr.vmem [resolvable:$true] %s15
      %21 = dma.hbm_to_vmem [thread:$0]  %s0, 512, %s16, [#allocation3], 128, 128, 8
    $region5: #{tpu_custom_call.1} parent=1 // pred_fallthru
      _
    // Predicated region
    $region6: #{tpu_custom_call.1} parent=1 // pred_check
      _
    $region7: #{tpu_custom_call.1} parent=1 // pred_check_branch
      %23 = sbr.rel (0) target = $region9
    $region8: #{tpu_custom_call.1} parent=1 // pred_region
      %s25 = ssub.s32 512, 512
      %26 = vsyncadd [#allocation6], %s25
      %s27 = sshll.u32 [#allocation5], 4
      %s28 = int_to_ptr.vmem [resolvable:$true] %s27
      %33 = dma.hbm_to_vmem [thread:$0]  %s1, 512, %s28, [#allocation6], 128, 128, 8
    $region9: #{tpu_custom_call.1} parent=1 // pred_fallthru
      _
    // Predicated region
    $region10: #{tpu_custom_call.1} parent=1 // pred_check
      _
    $region11: #{tpu_custom_call.1} parent=1 // pred_check_branch
      %35 = sbr.rel (0) target = $region13
    $region12: #{tpu_custom_call.1} parent=1 // pred_region
      %36 = dma.done [#allocation3], 512
    $region13: #{tpu_custom_call.1} parent=1 // pred_fallthru
      _
    // Predicated region
    $region14: #{tpu_custom_call.1} parent=1 // pred_check
      _
    $region15: #{tpu_custom_call.1} parent=1 // pred_check_branch
      %38 = sbr.rel (0) target = $region17
    $region16: #{tpu_custom_call.1} parent=1 // pred_region
      %39 = dma.done [#allocation6], 512
    $region17: #{tpu_custom_call.1} parent=1 // pred_fallthru
      _
    %v40 = vld [vmem:[#allocation2] sm:$0xff]
    %v41 = vld [vmem:[#allocation2 + $0x8] sm:$0xff]
    %v42 = vld [vmem:[#allocation2 + $0x10] sm:$0xff]
    %v43 = vld [vmem:[#allocation2 + $0x18] sm:$0xff]
    %v44 = vld [vmem:[#allocation5] sm:$0xff]
    %v45 = vld [vmem:[#allocation5 + $0x8] sm:$0xff]
    %v46 = vld [vmem:[#allocation5 + $0x10] sm:$0xff]
    %v47 = vld [vmem:[#allocation5 + $0x18] sm:$0xff]
    %v48 = vtanh.pop %v40
    %v49 = vtanh.pop %v41
    %v50 = vtanh.pop %v42
    %v51 = vtanh.pop %v43
    %v52 = vxor.u32 %v44, 2147483648
    %v53 = vxor.u32 %v45, 2147483648
    %v54 = vxor.u32 %v46, 2147483648
    %v55 = vxor.u32 %v47, 2147483648
    %v56 = vmul.f32 %v52, 1.442695
    %v57 = vpow.pop %v56
    %v58 = vmul.f32 %v53, 1.442695
    %v59 = vpow.pop %v58
    %v60 = vmul.f32 %v54, 1.442695
    %v61 = vpow.pop %v60
    %v62 = vmul.f32 %v55, 1.442695
    %v63 = vpow.pop %v62
    %v64 = vadd.f32 %v57, 1.0
    %v65 = vadd.f32 %v59, 1.0
    %v66 = vadd.f32 %v61, 1.0
    %v67 = vadd.f32 %v63, 1.0
    %v68 = vrcp.pop %v64
    %v69 = vmul.f32 1.0, %v68
    %v70 = vrcp.pop %v65
    %v71 = vmul.f32 1.0, %v70
    %v72 = vrcp.pop %v66
    %v73 = vmul.f32 1.0, %v72
    %v74 = vrcp.pop %v67
    %v75 = vmul.f32 1.0, %v74
    %v76 = vmul.f32 %v48, %v69
    %v77 = vmul.f32 %v49, %v71
    %v78 = vmul.f32 %v50, %v73
    %v79 = vmul.f32 %v51, %v75
    %80 = vst [vmem:[#allocation7] sm:$0xff] %v76
    %81 = vst [vmem:[#allocation7 + $0x8] sm:$0xff] %v77
    %82 = vst [vmem:[#allocation7 + $0x10] sm:$0xff] %v78
    %83 = vst [vmem:[#allocation7 + $0x18] sm:$0xff] %v79
    // Predicated region
    $region18: #{tpu_custom_call.1} parent=1 // pred_check
      _
    $region19: #{tpu_custom_call.1} parent=1 // pred_check_branch
      %85 = sbr.rel (0) target = $region21
    $region20: #{tpu_custom_call.1} parent=1 // pred_region
      %s87 = ssub.s32 512, 512
      %88 = vsyncadd [#allocation4], %s87
      %s89 = sshll.u32 [#allocation7], 4
      %s90 = int_to_ptr.vmem [resolvable:$true] %s89
      %95 = dma.vmem_to_hbm [thread:$0]  %s90, 512, %s2, [#allocation4], 128, 128, 8
    $region21: #{tpu_custom_call.1} parent=1 // pred_fallthru
      _
    // Predicated region
    $region22: #{tpu_custom_call.1} parent=1 // pred_check
      _
    $region23: #{tpu_custom_call.1} parent=1 // pred_check_branch
      %97 = sbr.rel (0) target = $region25
    $region24: #{tpu_custom_call.1} parent=1 // pred_region
      %98 = dma.done [#allocation4], 512
    $region25: #{tpu_custom_call.1} parent=1 // pred_fallthru
      _
    %99 = vsyncpa [#allocation3], 1
    %100 = vsyncpa [#allocation6], 1
    %101 = vsyncpa [#allocation4], 1

</llo_original>
